<compile_context>
chip_gen: v6e
topology: v6e:2x2x1
jax: 0.10.0
libtpu: 0.0.40
codegen_flags: <defaults>
</compile_context>

<pallas_src>
import functools
import math

import numpy as np

import jax
import jax.numpy as jnp
from jax.experimental import pallas as pl
from jax.experimental.pallas import tpu as pltpu


# ---------------------------------------------------------------------------
# Kernel
# ---------------------------------------------------------------------------
def _packed_affine_kernel(x_ref, r_ref, wx_ref, wr_ref, b_ref, o_ref):
    """out = x_packed @ blockdiag(A) + r_packed @ blockdiag(R) + tile(C).

    One row of x_ref holds `p` logical rows side by side; the block-diagonal
    composed weights apply the same affine map to every slot, so the output
    row is already in the final (M, out) memory layout (reshape back is free).
    Both dots hit the MXU; the bias add is a VPU broadcast.
    """
    o_ref[...] = (
        jnp.dot(x_ref[...], wx_ref[...], preferred_element_type=jnp.float32)
        + jnp.dot(r_ref[...], wr_ref[...], preferred_element_type=jnp.float32)
        + b_ref[...]
    ).astype(o_ref.dtype)


# ---------------------------------------------------------------------------
# Helpers
# ---------------------------------------------------------------------------
def _round_up(a, b):
    return ((a + b - 1) // b) * b


def _mxu_lane_target():
    """Target packed lane width: 128 on v5e (128x128 MXU), 256 on v6e/v7x."""
    try:
        kind = jax.devices()[0].device_kind.lower()
    except Exception:
        kind = ""
    return 128 if "v5" in kind else 256


def _choose_pack_factor(M, out_dim, target_lanes):
    """Pick pack factor p: p*out_dim is a multiple of 128 (lane-dense,
    unmasked stores), roughly one native MXU tile wide, preferring p | M so
    no row padding is needed."""
    p_align = 128 // math.gcd(out_dim, 128)            # smallest lane-dense p
    p_max = max(p_align, (target_lanes // max(out_dim, 1)) // p_align * p_align)
    for p in range(p_max, 0, -p_align):
        if M % p == 0:
            return p, False
    return p_align, True                                # rare: pad rows to p


def _choose_row_tile(m_packed, tm_target):
    """Packed rows per grid step.  Tiles are full-dim or a multiple of 8.
    >= 2 steps when there is enough work so ("parallel",) can use both v7x
    TensorCores; cap at tm_target (512 packed rows ~ 85% of HBM roofline)."""
    if m_packed < 16:
        return m_packed                                  # single step
    if m_packed > 2 * tm_target:
        return tm_target
    return _round_up((m_packed + 1) // 2, 8)             # exactly 2 steps


def _collapse_params_np(params):
    """Compose the whole (activation-free) network into one affine map.

    Done on the host in float64 (cheap insurance against precision loss when
    folding the 1e6 scale through deep/wide stacks), then cast to f32.
    """
    we = np.asarray(params["we"], np.float64)
    be = np.asarray(params["be"], np.float64)
    fc_w = [np.asarray(w, np.float64) for w in params["fc_w"]]
    fc_b = [np.asarray(b, np.float64) for b in params["fc_b"]]
    assert len(fc_w) >= 1
    E = we.shape[1]
    w0 = fc_w[0]
    w0a, w0b = w0[:E, :], w0[E:E + 1, :]                 # split cat([e, r]) rows
    A = (1.0e6 * we) @ w0a                               # fold 1e6 into weights
    R = w0b.copy()
    C = be @ w0a + fc_b[0]
    for w, b in zip(fc_w[1:], fc_b[1:]):
        A = A @ w
        R = R @ w
        C = C @ w + b
    return A, R, C                                       # (F,out), (1,out), (1,out)


# ---------------------------------------------------------------------------
# Factory: compose once per parameter set, return a fast forward fn
# ---------------------------------------------------------------------------
def make_critic_feature_forward(params, *, tm_target=512):
    A64, R64, C64 = _collapse_params_np(params)
    F_in, out_dim = A64.shape
    target_lanes = _mxu_lane_target()
    packed_cache = {}

    def _packed_weights(p):
        # Block-diagonal packing (host, cached per p; pure data movement so
        # float64 vs float32 makes no difference here).
        if p not in packed_cache:
            eye = np.eye(p, dtype=np.float64)
            wx = np.kron(eye, A64)                        # (p*F, p*out)
            wr = np.kron(eye, R64)                        # (p,   p*out)
            b = np.tile(C64, (1, p))                      # (1,   p*out)
            packed_cache[p] = (jnp.asarray(wx, jnp.float32),
                               jnp.asarray(wr, jnp.float32),
                               jnp.asarray(b, jnp.float32))
        return packed_cache[p]

    @functools.partial(jax.jit, static_argnames=("p", "tm", "pad_rows"))
    def _run(x, r, wx, wr, b, *, p, tm, pad_rows):
        B, S, F = x.shape
        M = B * S
        x2 = x.reshape(M, F).astype(jnp.float32)
        r2 = r.reshape(M, 1).astype(jnp.float32)
        if pad_rows:                                      # rare fallback path
            x2 = jnp.pad(x2, ((0, pad_rows), (0, 0)))
            r2 = jnp.pad(r2, ((0, pad_rows), (0, 0)))
        m_tot = M + pad_rows
        Mp = m_tot // p
        # Free, contiguous row packing: p logical rows per lane-dense row.
        xp = x2.reshape(Mp, p * F)
        rp = r2.reshape(Mp, p)
        n_out = p * out_dim                               # multiple of 128

        grid = (pl.cdiv(Mp, tm),)
        out = pl.pallas_call(
            _packed_affine_kernel,
            out_shape=jax.ShapeDtypeStruct((Mp, n_out), jnp.float32),
            grid_spec=pltpu.PrefetchScalarGridSpec(
                num_scalar_prefetch=0,
                grid=grid,
                in_specs=[
                    pl.BlockSpec((tm, p * F), lambda i: (i, 0)),   # packed x rows
                    pl.BlockSpec((tm, p), lambda i: (i, 0)),       # packed rewards
                    # Constant index_map -> fetched once, resident in VMEM.
                    pl.BlockSpec((p * F, n_out), lambda i: (0, 0)),  # blockdiag(A)
                    pl.BlockSpec((p, n_out), lambda i: (0, 0)),      # blockdiag(R)
                    pl.BlockSpec((1, n_out), lambda i: (0, 0)),      # tiled bias
                ],
                out_specs=pl.BlockSpec((tm, n_out), lambda i: (i, 0)),
            ),
            compiler_params=pltpu.CompilerParams(
                # Row tiles are independent -> shard across TensorCores.
                dimension_semantics=("parallel",),
            ),
        )(xp, rp, wx, wr, b)

        if pad_rows:
            out = out.reshape(m_tot, out_dim)[:M]
        # Contiguous no-op reshape back to (B, S, out).
        return out.reshape(B, S, out_dim)

    def forward(channel_matrix, reward_array):
        B, S, F = channel_matrix.shape
        assert F == F_in
        assert reward_array.shape == (B, S, 1)
        M = B * S
        p, needs_pad = _choose_pack_factor(M, out_dim, target_lanes)
        pad_rows = (-M) % p if needs_pad else 0
        Mp = (M + pad_rows) // p
        tm = _choose_row_tile(Mp, tm_target)
        wx, wr, b = _packed_weights(p)
        return _run(channel_matrix, reward_array, wx, wr, b,
                    p=p, tm=tm, pad_rows=pad_rows)

    return forward


# ---------------------------------------------------------------------------
# Parameter init (PyTorch-style) and plain-JAX reference
# ---------------------------------------------------------------------------
def _init_params(key, flatten_dim, embedding_dim, hidden_dim):
    def linear(k, fan_in, fan_out):
        kw, kb = jax.random.split(k)
        bound = 1.0 / jnp.sqrt(jnp.float32(fan_in))
        w = jax.random.uniform(kw, (fan_in, fan_out), jnp.float32, -bound, bound)
        b = jax.random.uniform(kb, (1, fan_out), jnp.float32, -bound, bound)
        return w, b

    keys = jax.random.split(key, 1 + len(hidden_dim))
    we, be = linear(keys[0], flatten_dim, embedding_dim)
    fc_w, fc_b = [], []
    in_dim = embedding_dim + 1
    for i, h in enumerate(hidden_dim):
        w, b = linear(keys[1 + i], in_dim, h)
        fc_w.append(w)
        fc_b.append(b)
        in_dim = h
    return {"we": we, "be": be, "fc_w": fc_w, "fc_b": fc_b}


def _reference_forward(channel_matrix, reward_array, params):
    """Layer-by-layer reference mirroring the PyTorch module exactly."""
    x = 1.0e6 * channel_matrix
    e = jnp.einsum("bsf,fe->bse", x, params["we"]) + params["be"][0]
    h = jnp.concatenate([e, reward_array], axis=2)
    for w, b in zip(params["fc_w"], params["fc_b"]):
        h = jnp.einsum("bsi,io->bso", h, w) + b[0]
    return h


# ---------------------------------------------------------------------------
if __name__ == "__main__":
    batch = 2
    seq = 8                       # axis over which cat happens at dim=2
    flatten_dim = 32
    embedding_dim = 32
    hidden_dim = [32, 32]         # fc_layer_number = 2

    key = jax.random.PRNGKey(0)
    k_x, k_r, k_p = jax.random.split(key, 3)

    # channel_matrix values are tiny (hence the 1e6 rescale in forward)
    channel_matrix = 1e-6 * jax.random.normal(
        k_x, (batch, seq, flatten_dim), jnp.float32)
    reward_array = jax.random.normal(k_r, (batch, seq, 1), jnp.float32)

    params = _init_params(k_p, flatten_dim, embedding_dim, hidden_dim)

    forward = make_critic_feature_forward(params)
    out = jax.block_until_ready(forward(channel_matrix, reward_array))

    ref = _reference_forward(channel_matrix, reward_array, params)
    assert out.shape == (batch, seq, hidden_dim[-1])
    assert jnp.allclose(out, ref, rtol=1e-4, atol=1e-4), "mismatch vs reference"

    print("KERNEL_OK")
</pallas_src>

<mosaic_0001>
module attributes {stable_mosaic.version = 11 : i64} {
  func.func @_packed_affine_kernel(%arg0: i32, %arg1: memref<2x256xf32, #tpu.memory_space<vmem>>, %arg2: memref<2x8xf32, #tpu.memory_space<vmem>>, %arg3: memref<256x256xf32, #tpu.memory_space<vmem>>, %arg4: memref<8x256xf32, #tpu.memory_space<vmem>>, %arg5: memref<1x256xf32, #tpu.memory_space<vmem>>, %arg6: memref<2x256xf32, #tpu.memory_space<vmem>>) attributes {dimension_semantics = [#tpu.dimension_semantics<parallel>], iteration_bounds = array<i64: 1>, scalar_prefetch = 0 : i64, scratch_operands = 0 : i64, tpu.core_type = #tpu.core_type<tc>, window_params = [{transform_indices = @transform_0, window_bounds = array<i64: 2, 256>}, {transform_indices = @transform_1, window_bounds = array<i64: 2, 8>}, {pipeline_mode = #tpu.pipeline_mode<synchronous>, transform_indices = @transform_2, window_bounds = array<i64: 256, 256>}, {pipeline_mode = #tpu.pipeline_mode<synchronous>, transform_indices = @transform_3, window_bounds = array<i64: 8, 256>}, {pipeline_mode = #tpu.pipeline_mode<synchronous>, transform_indices = @transform_4, window_bounds = array<i64: 1, 256>}, {transform_indices = @transform_5, window_bounds = array<i64: 2, 256>}]} {
    %c0 = arith.constant 0 : index
    %c0_0 = arith.constant 0 : index
    %0 = vector.load %arg1[%c0, %c0_0] : memref<2x256xf32, #tpu.memory_space<vmem>>, vector<2x256xf32>
    %c0_1 = arith.constant 0 : index
    %c0_2 = arith.constant 0 : index
    %1 = vector.load %arg3[%c0_1, %c0_2] : memref<256x256xf32, #tpu.memory_space<vmem>>, vector<256x256xf32>
    %cst = arith.constant dense<0.000000e+00> : vector<2x256xf32>
    %2 = tpu.matmul %0, %1, %cst {dimension_numbers = #tpu.dot_dimension_numbers<[1], [0], [0], [1], [0, 0, 1, 1], [], []>} : vector<2x256xf32>, vector<256x256xf32>, vector<2x256xf32> -> vector<2x256xf32>
    %c0_3 = arith.constant 0 : index
    %c0_4 = arith.constant 0 : index
    %3 = vector.load %arg2[%c0_3, %c0_4] : memref<2x8xf32, #tpu.memory_space<vmem>>, vector<2x8xf32>
    %c0_5 = arith.constant 0 : index
    %c0_6 = arith.constant 0 : index
    %4 = vector.load %arg4[%c0_5, %c0_6] : memref<8x256xf32, #tpu.memory_space<vmem>>, vector<8x256xf32>
    %cst_7 = arith.constant dense<0.000000e+00> : vector<2x256xf32>
    %5 = tpu.matmul %3, %4, %cst_7 {dimension_numbers = #tpu.dot_dimension_numbers<[1], [0], [0], [1], [0, 0, 1, 1], [], []>} : vector<2x8xf32>, vector<8x256xf32>, vector<2x256xf32> -> vector<2x256xf32>
    %6 = arith.addf %2, %5 : vector<2x256xf32>
    %c0_8 = arith.constant 0 : index
    %c0_9 = arith.constant 0 : index
    %7 = vector.load %arg5[%c0_8, %c0_9] : memref<1x256xf32, #tpu.memory_space<vmem>>, vector<1x256xf32>
    %8 = vector.broadcast %7 : vector<1x256xf32> to vector<2x256xf32>
    %9 = arith.addf %6, %8 : vector<2x256xf32>
    %c0_10 = arith.constant 0 : index
    %c0_11 = arith.constant 0 : index
    %10 = vector.load %arg6[%c0_10, %c0_11] : memref<2x256xf32, #tpu.memory_space<vmem>>, vector<2x256xf32>
    tpu.vector_store %arg6[%c0_10, %c0_11], %9 {strides = array<i32>} : memref<2x256xf32, #tpu.memory_space<vmem>>, vector<2x256xf32>,
    return
  }
  func.func @transform_0(%arg0: i32) -> (i32, i32) {
    %c0_i32 = arith.constant 0 : i32
    %c0_i32_0 = arith.constant 0 : i32
    return %arg0, %c0_i32 : i32, i32
  }
  func.func @transform_1(%arg0: i32) -> (i32, i32) {
    %c0_i32 = arith.constant 0 : i32
    %c0_i32_0 = arith.constant 0 : i32
    return %arg0, %c0_i32 : i32, i32
  }
  func.func @transform_2(%arg0: i32) -> (i32, i32) {
    %c0_i32 = arith.constant 0 : i32
    %c0_i32_0 = arith.constant 0 : i32
    %c0_i32_1 = arith.constant 0 : i32
    return %c0_i32, %c0_i32_0 : i32, i32
  }
  func.func @transform_3(%arg0: i32) -> (i32, i32) {
    %c0_i32 = arith.constant 0 : i32
    %c0_i32_0 = arith.constant 0 : i32
    %c0_i32_1 = arith.constant 0 : i32
    return %c0_i32, %c0_i32_0 : i32, i32
  }
  func.func @transform_4(%arg0: i32) -> (i32, i32) {
    %c0_i32 = arith.constant 0 : i32
    %c0_i32_0 = arith.constant 0 : i32
    %c0_i32_1 = arith.constant 0 : i32
    return %c0_i32, %c0_i32_0 : i32, i32
  }
  func.func @transform_5(%arg0: i32) -> (i32, i32) {
    %c0_i32 = arith.constant 0 : i32
    %c0_i32_0 = arith.constant 0 : i32
    return %arg0, %c0_i32 : i32, i32
  }
}

</mosaic_0001>

<llo_original>
// kernel: _run.1
$region0: #{_run.1}
  #allocation0 [shape = 'u32[]', space=smem, size = 0x4, offset = 0x4, fixed_abs, tag = 'smem constant byte address 0x4 - core index']
  #allocation1 [shape = 'u32[144,128]{1,0:T(1,128)}', space=vmem, size = 0x12000, scoped, tag = 'internal scratch']
  %s0 = inlined_call_operand.vmem [shape: f32[2,256], index: 0, kind: input, shape index: {}]
  %s1 = inlined_call_operand.vmem [shape: f32[2,8], index: 1, kind: input, shape index: {}]
  %s2 = inlined_call_operand.hbm [shape: f32[256,256], index: 2, kind: input, shape index: {}]
  %s3 = inlined_call_operand.vmem [shape: f32[8,256], index: 3, kind: input, shape index: {}]
  %s4 = inlined_call_operand.vmem [shape: f32[1,256], index: 4, kind: input, shape index: {}]
  %s5 = inlined_call_operand.vmem [shape: f32[2,256], index: 5, kind: output, shape index: {}]
  %s6 = sld [smem:[#allocation0]]
  $region34: #{_run.1} parent=0
    _
  %s8 = ssub.s32 1, %s6
  %s9 = scalar_select 0, %s8, %s6
  $region1: #{_run.1} parent=0
    #allocation2 [shape = 'u8[262144]{0}', space=vmem, size = 0x40000, scoped, tag = 'input window, operand 2, single buffered']
    #allocation3 [shape = 's32[1]{0}', space=sflag, size = 0x4, scoped, tag = 'scoped memory for _run.1']
    %10 = vsyncpa [#allocation3], 0
    // Predicated region
    $region2: #{_run.1} parent=1 // pred_check
      _
    $region3: #{_run.1} parent=1 // pred_check_branch
      %12 = sbr.rel (0) target = $region5
    $region4: #{_run.1} parent=1 // pred_region
      _
    $region5: #{_run.1} parent=1 // pred_fallthru
      _
    // Predicated region
    $region6: #{_run.1} parent=1 // pred_check
      _
    $region7: #{_run.1} parent=1 // pred_check_branch
      %14 = sbr.rel (0) target = $region9
    $region8: #{_run.1} parent=1 // pred_region
      _
    $region9: #{_run.1} parent=1 // pred_fallthru
      _
    // Predicated region
    $region10: #{_run.1} parent=1 // pred_check
      _
    $region11: #{_run.1} parent=1 // pred_check_branch
      %16 = sbr.rel (0) target = $region13
    $region12: #{_run.1} parent=1 // pred_region
      %s18 = ssub.s32 8192, 8192
      %19 = vsyncadd [#allocation3], %s18
      %s20 = sshll.u32 [#allocation2], 4
      %s21 = int_to_ptr.vmem [resolvable:$true] %s20
      %26 = dma.hbm_to_vmem [thread:$0]  %s2, 8192, %s21, [#allocation3], 256, 256, 16
    $region13: #{_run.1} parent=1 // pred_fallthru
      _
    // Predicated region
    $region14: #{_run.1} parent=1 // pred_check
      _
    $region15: #{_run.1} parent=1 // pred_check_branch
      %28 = sbr.rel (0) target = $region17
    $region16: #{_run.1} parent=1 // pred_region
      _
    $region17: #{_run.1} parent=1 // pred_fallthru
      _
    // Predicated region
    $region18: #{_run.1} parent=1 // pred_check
      _
    $region19: #{_run.1} parent=1 // pred_check_branch
      %30 = sbr.rel (0) target = $region21
    $region20: #{_run.1} parent=1 // pred_region
      _
    $region21: #{_run.1} parent=1 // pred_fallthru
      _
    // Predicated region
    $region22: #{_run.1} parent=1 // pred_check
      _
    $region23: #{_run.1} parent=1 // pred_check_branch
      %32 = sbr.rel (0) target = $region25
    $region24: #{_run.1} parent=1 // pred_region
      %33 = dma.done [#allocation3], 8192
    $region25: #{_run.1} parent=1 // pred_fallthru
      _
    %v34 = vld [vmem:[%s0] sm:$0xf]
    %v35 = vld [vmem:[#allocation2] sm:$0xff]
    %v36 = vld [vmem:[#allocation2 + $0x8] sm:$0xff]
    %v37 = vld [vmem:[#allocation2 + $0x10] sm:$0xff]
    %v38 = vld [vmem:[#allocation2 + $0x18] sm:$0xff]
    %v39 = vld [vmem:[#allocation2 + $0x20] sm:$0xff]
    %v40 = vld [vmem:[#allocation2 + $0x28] sm:$0xff]
    %v41 = vld [vmem:[#allocation2 + $0x30] sm:$0xff]
    %v42 = vld [vmem:[#allocation2 + $0x38] sm:$0xff]
    %v43 = vld [vmem:[#allocation2 + $0x40] sm:$0xff]
    %v44 = vld [vmem:[#allocation2 + $0x48] sm:$0xff]
    %v45 = vld [vmem:[#allocation2 + $0x50] sm:$0xff]
    %v46 = vld [vmem:[#allocation2 + $0x58] sm:$0xff]
    %v47 = vld [vmem:[#allocation2 + $0x60] sm:$0xff]
    %v48 = vld [vmem:[#allocation2 + $0x68] sm:$0xff]
    %v49 = vld [vmem:[#allocation2 + $0x70] sm:$0xff]
    %v50 = vld [vmem:[#allocation2 + $0x78] sm:$0xff]
    %v51 = vld [vmem:[#allocation2 + $0x80] sm:$0xff]
    %v52 = vld [vmem:[#allocation2 + $0x88] sm:$0xff]
    %v53 = vld [vmem:[#allocation2 + $0x90] sm:$0xff]
    %v54 = vld [vmem:[#allocation2 + $0x98] sm:$0xff]
    %v55 = vld [vmem:[#allocation2 + $0xa0] sm:$0xff]
    %v56 = vld [vmem:[#allocation2 + $0xa8] sm:$0xff]
    %v57 = vld [vmem:[#allocation2 + $0xb0] sm:$0xff]
    %v58 = vld [vmem:[#allocation2 + $0xb8] sm:$0xff]
    %v59 = vld [vmem:[#allocation2 + $0xc0] sm:$0xff]
    %v60 = vld [vmem:[#allocation2 + $0xc8] sm:$0xff]
    %v61 = vld [vmem:[#allocation2 + $0xd0] sm:$0xff]
    %v62 = vld [vmem:[#allocation2 + $0xd8] sm:$0xff]
    %v63 = vld [vmem:[#allocation2 + $0xe0] sm:$0xff]
    %v64 = vld [vmem:[#allocation2 + $0xe8] sm:$0xff]
    %v65 = vld [vmem:[#allocation2 + $0xf0] sm:$0xff]
    %v66 = vld [vmem:[#allocation2 + $0xf8] sm:$0xff]
    %v67 = vld [vmem:[#allocation2 + $0x100] sm:$0xff]
    %v68 = vld [vmem:[#allocation2 + $0x108] sm:$0xff]
    %v69 = vld [vmem:[#allocation2 + $0x110] sm:$0xff]
    %v70 = vld [vmem:[#allocation2 + $0x118] sm:$0xff]
    %v71 = vld [vmem:[#allocation2 + $0x120] sm:$0xff]
    %v72 = vld [vmem:[#allocation2 + $0x128] sm:$0xff]
    %v73 = vld [vmem:[#allocation2 + $0x130] sm:$0xff]
    %v74 = vld [vmem:[#allocation2 + $0x138] sm:$0xff]
    %v75 = vld [vmem:[#allocation2 + $0x140] sm:$0xff]
    %v76 = vld [vmem:[#allocation2 + $0x148] sm:$0xff]
    %v77 = vld [vmem:[#allocation2 + $0x150] sm:$0xff]
    %v78 = vld [vmem:[#allocation2 + $0x158] sm:$0xff]
    %v79 = vld [vmem:[#allocation2 + $0x160] sm:$0xff]
    %v80 = vld [vmem:[#allocation2 + $0x168] sm:$0xff]
    %v81 = vld [vmem:[#allocation2 + $0x170] sm:$0xff]
    %v82 = vld [vmem:[#allocation2 + $0x178] sm:$0xff]
    %v83 = vld [vmem:[#allocation2 + $0x180] sm:$0xff]
    %v84 = vld [vmem:[#allocation2 + $0x188] sm:$0xff]
    %v85 = vld [vmem:[#allocation2 + $0x190] sm:$0xff]
    %v86 = vld [vmem:[#allocation2 + $0x198] sm:$0xff]
    %v87 = vld [vmem:[#allocation2 + $0x1a0] sm:$0xff]
    %v88 = vld [vmem:[#allocation2 + $0x1a8] sm:$0xff]
    %v89 = vld [vmem:[#allocation2 + $0x1b0] sm:$0xff]
    %v90 = vld [vmem:[#allocation2 + $0x1b8] sm:$0xff]
    %v91 = vld [vmem:[#allocation2 + $0x1c0] sm:$0xff]
    %v92 = vld [vmem:[#allocation2 + $0x1c8] sm:$0xff]
    %v93 = vld [vmem:[#allocation2 + $0x1d0] sm:$0xff]
    %v94 = vld [vmem:[#allocation2 + $0x1d8] sm:$0xff]
    %v95 = vld [vmem:[#allocation2 + $0x1e0] sm:$0xff]
    %v96 = vld [vmem:[#allocation2 + $0x1e8] sm:$0xff]
    %v97 = vld [vmem:[#allocation2 + $0x1f0] sm:$0xff]
    %v98 = vld [vmem:[#allocation2 + $0x1f8] sm:$0xff]
    %v99 = vld [vmem:[%s1] sm:$0x3]
    %v100 = vld [vmem:[%s3] sm:$0xff]
    %v101 = vld [vmem:[%s3 + $0x8] sm:$0xff]
    %vm102 = vcmask 64512
    %v104 = vsel %vm102, %v99, 0
    %106 = vmatprep.subr.mxu0 0.0
    %107 = vmatpush1.msra.mxu0 0.0
    %108 = vmatprep.subr.mxu0 0.0
    %109 = vmatpush1.msra.mxu0 0.0
    %110 = vmatprep.subr.mxu0 0.0
    %111 = vmatpush1.msra.mxu0 0.0
    %112 = vmatprep.subr.mxu0 0.0
    %113 = vmatpush1.msra.mxu0 0.0
    %114 = vmatprep.subr.mxu0 0.0
    %115 = vmatpush1.msra.mxu0 0.0
    %116 = vmatprep.subr.mxu0 0.0
    %117 = vmatpush1.msra.mxu0 0.0
    %118 = vmatprep.subr.mxu0 0.0
    %119 = vmatpush1.msra.mxu0 0.0
    %120 = vmatprep.subr.mxu0 0.0
    %121 = vmatpush1.msra.mxu0 0.0
    %122 = vmatprep.subr.mxu0 0.0
    %123 = vmatpush1.msra.mxu0 0.0
    %124 = vmatprep.subr.mxu0 0.0
    %125 = vmatpush1.msra.mxu0 0.0
    %126 = vmatprep.subr.mxu0 0.0
    %127 = vmatpush1.msra.mxu0 0.0
    %128 = vmatprep.subr.mxu0 0.0
    %129 = vmatpush1.msra.mxu0 0.0
    %130 = vmatprep.subr.mxu0 0.0
    %131 = vmatpush1.msra.mxu0 0.0
    %132 = vmatprep.subr.mxu0 0.0
    %133 = vmatpush1.msra.mxu0 0.0
    %134 = vmatprep.subr.mxu0 0.0
    %135 = vmatpush1.msra.mxu0 0.0
    %136 = vmatprep.subr.mxu0 %v101
    %137 = vmatpush1.msra.mxu0 %v100
    %138 = vmatprep.subr.mxu0 0.0
    %139 = vmatpush2.msra.mxu0 0.0
    %140 = vmatprep.subr.mxu0 0.0
    %141 = vmatpush2.msra.mxu0 0.0
    %142 = vmatprep.subr.mxu0 0.0
    %143 = vmatpush2.msra.mxu0 0.0
    %144 = vmatprep.subr.mxu0 0.0
    %145 = vmatpush2.msra.mxu0 0.0
    %146 = vmatprep.subr.mxu0 0.0
    %147 = vmatpush2.msra.mxu0 0.0
    %148 = vmatprep.subr.mxu0 0.0
    %149 = vmatpush2.msra.mxu0 0.0
    %150 = vmatprep.subr.mxu0 0.0
    %151 = vmatpush2.msra.mxu0 0.0
    %152 = vmatprep.subr.mxu0 0.0
    %153 = vmatpush2.msra.mxu0 0.0
    %154 = vmatprep.subr.mxu0 0.0
    %155 = vmatpush2.msra.mxu0 0.0
    %156 = vmatprep.subr.mxu0 0.0
    %157 = vmatpush2.msra.mxu0 0.0
    %158 = vmatprep.subr.mxu0 0.0
    %159 = vmatpush2.msra.mxu0 0.0
    %160 = vmatprep.subr.mxu0 0.0
    %161 = vmatpush2.msra.mxu0 0.0
    %162 = vmatprep.subr.mxu0 0.0
    %163 = vmatpush2.msra.mxu0 0.0
    %164 = vmatprep.subr.mxu0 0.0
    %165 = vmatpush2.msra.mxu0 0.0
    %166 = vmatprep.subr.mxu0 0.0
    %167 = vmatpush2.msra.mxu0 0.0
    %168 = vmatprep.subr.mxu0 0.0
    %169 = vmatpush2.msra.mxu0 0.0
    %170 = vmatprep.mubr.f32.mxu0 0.0
    %171 = vmatmul.mubr.f32.gmra.mxu0 %v104
    %v172 = vpop.f32.mrf.mxu0
    %v173 = vadd.f32 0.0, %v172
    %v174 = vpop.f32.mrf.mxu0
    %v175 = vadd.f32 0.0, %v174
    %176 = vdwg.mxu0
    %v179 = vunpack.c.l.s4 1983009808
    %v180 = vunpack.c.0.s8 %v179
    %v181 = vlaneseq
    %v182 = vshrl.u32 %v181, 7
    %v183 = vsub.s32 %v180, %v182
    %v184 = vrot.slane %v34, %v183
    %v185 = vcombine.high %v184, %v184
    %188 = vmatprep.subr.mxu0 %v66
    %189 = vmatpush1.msra.mxu0 %v65
    %190 = vmatprep.subr.mxu0 %v64
    %191 = vmatpush1.msra.mxu0 %v63
    %192 = vmatprep.subr.mxu0 %v62
    %193 = vmatpush1.msra.mxu0 %v61
    %194 = vmatprep.subr.mxu0 %v60
    %195 = vmatpush1.msra.mxu0 %v59
    %196 = vmatprep.subr.mxu0 %v58
    %197 = vmatpush1.msra.mxu0 %v57
    %198 = vmatprep.subr.mxu0 %v56
    %199 = vmatpush1.msra.mxu0 %v55
    %200 = vmatprep.subr.mxu0 %v54
    %201 = vmatpush1.msra.mxu0 %v53
    %202 = vmatprep.subr.mxu0 %v52
    %203 = vmatpush1.msra.mxu0 %v51
    %204 = vmatprep.subr.mxu0 %v50
    %205 = vmatpush1.msra.mxu0 %v49
    %206 = vmatprep.subr.mxu0 %v48
    %207 = vmatpush1.msra.mxu0 %v47
    %208 = vmatprep.subr.mxu0 %v46
    %209 = vmatpush1.msra.mxu0 %v45
    %210 = vmatprep.subr.mxu0 %v44
    %211 = vmatpush1.msra.mxu0 %v43
    %212 = vmatprep.subr.mxu0 %v42
    %213 = vmatpush1.msra.mxu0 %v41
    %214 = vmatprep.subr.mxu0 %v40
    %215 = vmatpush1.msra.mxu0 %v39
    %216 = vmatprep.subr.mxu0 %v38
    %217 = vmatpush1.msra.mxu0 %v37
    %218 = vmatprep.subr.mxu0 %v36
    %219 = vmatpush1.msra.mxu0 %v35
    %220 = vmatprep.subr.mxu0 %v98
    %221 = vmatpush2.msra.mxu0 %v97
    %222 = vmatprep.subr.mxu0 %v96
    %223 = vmatpush2.msra.mxu0 %v95
    %224 = vmatprep.subr.mxu0 %v94
    %225 = vmatpush2.msra.mxu0 %v93
    %226 = vmatprep.subr.mxu0 %v92
    %227 = vmatpush2.msra.mxu0 %v91
    %228 = vmatprep.subr.mxu0 %v90
    %229 = vmatpush2.msra.mxu0 %v89
    %230 = vmatprep.subr.mxu0 %v88
    %231 = vmatpush2.msra.mxu0 %v87
    %232 = vmatprep.subr.mxu0 %v86
    %233 = vmatpush2.msra.mxu0 %v85
    %234 = vmatprep.subr.mxu0 %v84
    %235 = vmatpush2.msra.mxu0 %v83
    %236 = vmatprep.subr.mxu0 %v82
    %237 = vmatpush2.msra.mxu0 %v81
    %238 = vmatprep.subr.mxu0 %v80
    %239 = vmatpush2.msra.mxu0 %v79
    %240 = vmatprep.subr.mxu0 %v78
    %241 = vmatpush2.msra.mxu0 %v77
    %242 = vmatprep.subr.mxu0 %v76
    %243 = vmatpush2.msra.mxu0 %v75
    %244 = vmatprep.subr.mxu0 %v74
    %245 = vmatpush2.msra.mxu0 %v73
    %246 = vmatprep.subr.mxu0 %v72
    %247 = vmatpush2.msra.mxu0 %v71
    %248 = vmatprep.subr.mxu0 %v70
    %249 = vmatpush2.msra.mxu0 %v69
    %250 = vmatprep.subr.mxu0 %v68
    %251 = vmatpush2.msra.mxu0 %v67
    %252 = vmatprep.mubr.f32.mxu0 %v185
    %253 = vmatmul.mubr.f32.gmra.mxu0 %v184
    %v254 = vpop.f32.mrf.mxu0
    %v255 = vadd.f32 %v173, %v254
    %v256 = vpop.f32.mrf.mxu0
    %v257 = vadd.f32 %v175, %v256
    %258 = vdwg.mxu0
    %v259 = vld [vmem:[%s4] sm:$0x3]
    %v261 = vlaneseq
    %v262 = vshrl.u32 %v261, 7
    %v263 = vsub.s32 0, %v262
    %v264 = vrot.slane %v259, %v263
    %v265 = vlaneseq
    %v266 = vshrl.u32 %v265, 7
    %v267 = vsub.s32 1, %v266
    %v268 = vrot.slane %v259, %v267
    %v271 = vadd.f32 %v255, %v264
    %v272 = vadd.f32 %v257, %v268
    %v275 = vcombine.low %v271, %v272
    %v277 = vunpack.c.l.s4 1983009808
    %v278 = vunpack.c.0.s8 %v277
    %v279 = vlaneseq
    %v280 = vshrl.u32 %v279, 7
    %v281 = vsub.s32 %v278, %v280
    %v282 = vrot.slane %v275, %v281
    %284 = vst [vmem:[%s5] sm:$0xf] %v282
    // Predicated region
    $region26: #{_run.1} parent=1 // pred_check
      _
    $region27: #{_run.1} parent=1 // pred_check_branch
      %286 = sbr.rel (0) target = $region29
    $region28: #{_run.1} parent=1 // pred_region
      _
    $region29: #{_run.1} parent=1 // pred_fallthru
      _
    // Predicated region
    $region30: #{_run.1} parent=1 // pred_check
      _
    $region31: #{_run.1} parent=1 // pred_check_branch
      %288 = sbr.rel (0) target = $region33
    $region32: #{_run.1} parent=1 // pred_region
      _
    $region33: #{_run.1} parent=1 // pred_fallthru
      _
    %289 = vsyncpa [#allocation3], 1

</llo_original>
